<compile_context>
chip_gen: v7x
topology: tpu7x:2x2x1
jax: 0.10.0
libtpu: 0.0.40
codegen_flags: <defaults>
</compile_context>

<pallas_src>
import math

import jax
import jax.numpy as jnp
from jax.experimental import pallas as pl
from jax.experimental.pallas import tpu as pltpu

_INV_SQRT2 = 1.0 / math.sqrt(2.0)


def _gelu_kernel(x_ref, o_ref):
    xf = x_ref[...].astype(jnp.float32)
    y = xf * 0.5 * (1.0 + jax.lax.erf(xf * _INV_SQRT2))
    o_ref[...] = y.astype(o_ref.dtype)


def _gelu_jnp(x):
    """Plain-JAX exact GELU (reference / tiny-tail path)."""
    xf = x.astype(jnp.float32)
    return (xf * 0.5 * (1.0 + jax.lax.erf(xf * _INV_SQRT2))).astype(x.dtype)


# Widest lane-dense candidates first (all multiples of 128).
_LANE_CANDIDATES = (4096, 2048, 1024, 512, 256, 128)


def _tpu_block_policy():
    """Return (target_block_bytes, vmem_limit_bytes) tuned per TPU generation."""
    vmem = 0
    try:
        info = pltpu.get_tpu_info()
        vmem = int(getattr(info, "vmem_capacity_bytes", 0) or 0)
    except Exception:
        vmem = 0
    if vmem and vmem <= 80 * 1024 * 1024:
        # v7x-class: 64 MiB physical VMEM / 32 MiB scoped default.
        # ~7 MiB blocks -> ~28 MiB double-buffered in+out, inside the default.
        return 7 * 1024 * 1024, None
    # v5e / v6e class (128 MiB physical VMEM). 4 MiB blocks sit near the HBM
    # roofline on v6e; raise the scoped limit so v5e's 16 MiB default doesn't
    # reject the ~16 MiB double-buffered footprint.
    return 4 * 1024 * 1024, 48 * 1024 * 1024


def _pick_lanes(n):
    for cand in _LANE_CANDIDATES:
        if n % cand == 0:
            return cand
    return 128


def _gelu_2d(x2d):
    """Run the Pallas GELU kernel on a contiguous (rows, lanes) view."""
    rows, lanes = x2d.shape
    dtype = x2d.dtype
    itemsize = jnp.dtype(dtype).itemsize
    # Block-row multiple that is legal/efficient for f32 (8) and packed
    # sub-32-bit dtypes (32 covers bf16/fp8 sublane packing).
    row_quant = 32 if itemsize < 4 else 8
    target_bytes, vmem_limit = _tpu_block_policy()

    tile_rows = (target_bytes // (lanes * itemsize)) // row_quant * row_quant
    tile_rows = max(row_quant, tile_rows)

    # Guarantee >= 4 grid steps when the tensor is big enough, so both v7x
    # TensorCores get sharded work and the DMA pipeline overlaps.
    min_steps = 4
    if rows >= min_steps * row_quant:
        cap = max(row_quant, (pl.cdiv(rows, min_steps) // row_quant) * row_quant)
        tile_rows = min(tile_rows, cap)

    if tile_rows >= rows:
        tile_rows = rows  # full dim is always a legal block dim

    grid = (pl.cdiv(rows, tile_rows),)

    compiler_kwargs = dict(dimension_semantics=("parallel",))
    if vmem_limit is not None:
        compiler_kwargs["vmem_limit_bytes"] = int(vmem_limit)

    return pl.pallas_call(
        _gelu_kernel,
        out_shape=jax.ShapeDtypeStruct((rows, lanes), dtype),
        grid_spec=pltpu.PrefetchScalarGridSpec(
            num_scalar_prefetch=0,
            grid=grid,
            in_specs=[pl.BlockSpec((tile_rows, lanes), lambda i: (i, 0))],
            out_specs=pl.BlockSpec((tile_rows, lanes), lambda i: (i, 0)),
        ),
        compiler_params=pltpu.CompilerParams(**compiler_kwargs),
    )(x2d)


def gelu_pallas(x):
    """Elementwise exact GELU via a Pallas TPU kernel. Works on any shape."""
    orig_shape = x.shape
    n = int(x.size)
    if n == 0:
        return x

    x_flat = jnp.reshape(x, (-1,))

    if n % 128 == 0:
        lanes = _pick_lanes(n)
        out2d = _gelu_2d(jnp.reshape(x_flat, (n // lanes, lanes)))
        return jnp.reshape(out2d, orig_shape)

    # Misaligned size (rare): kernel on the largest 128-aligned prefix, plain
    # jnp on the <128-element tail. Avoids a full-tensor pad + slice round-trip.
    n_main = (n // 128) * 128
    tail = _gelu_jnp(x_flat[n_main:])
    if n_main == 0:
        return jnp.reshape(tail, orig_shape)
    lanes = _pick_lanes(n_main)
    main2d = _gelu_2d(jnp.reshape(x_flat[:n_main], (n_main // lanes, lanes)))
    out_flat = jnp.concatenate([jnp.reshape(main2d, (-1,)), tail])
    return jnp.reshape(out_flat, orig_shape)


def gelu_ref(x):
    return _gelu_jnp(x)


if __name__ == "__main__":
    key = jax.random.PRNGKey(0)

    # NCHW-style input consistent with the vision model context.
    x = jax.random.normal(key, (2, 4, 16, 16), dtype=jnp.float32)
    out = jax.block_until_ready(gelu_pallas(x))
    ref = gelu_ref(x)
    assert out.shape == x.shape and out.dtype == x.dtype
    assert jnp.allclose(out, ref, atol=1e-5, rtol=1e-5)

    # Misaligned size (exercises the prefix+tail path; here n < 128 -> pure tail).
    x2 = jax.random.normal(jax.random.PRNGKey(1), (3, 5, 7), dtype=jnp.float32)
    out2 = jax.block_until_ready(gelu_pallas(x2))
    assert jnp.allclose(out2, gelu_ref(x2), atol=1e-5, rtol=1e-5)

    # bf16 activations (common LXMERT-style case).
    x3 = jax.random.normal(jax.random.PRNGKey(2), (2, 8, 32), dtype=jnp.bfloat16)
    out3 = jax.block_until_ready(gelu_pallas(x3))
    assert out3.dtype == jnp.bfloat16
    assert jnp.allclose(out3.astype(jnp.float32),
                        gelu_ref(x3).astype(jnp.float32), atol=2e-2, rtol=2e-2)

    # ViT-like activation: exercises a multi-step 'parallel' grid with a
    # partial (masked) last block.
    x4 = jax.random.normal(jax.random.PRNGKey(3), (2, 197, 768), dtype=jnp.float32)
    out4 = jax.block_until_ready(gelu_pallas(x4))
    assert jnp.allclose(out4, gelu_ref(x4), atol=1e-5, rtol=1e-5)

    print("KERNEL_OK")
</pallas_src>

<mosaic_0001>
module attributes {stable_mosaic.version = 11 : i64} {
  func.func @_gelu_kernel(%arg0: i32, %arg1: memref<1x2048xf32, #tpu.memory_space<vmem>>, %arg2: memref<1x2048xf32, #tpu.memory_space<vmem>>) attributes {dimension_semantics = [#tpu.dimension_semantics<parallel>], iteration_bounds = array<i64: 1>, scalar_prefetch = 0 : i64, scratch_operands = 0 : i64, tpu.core_type = #tpu.core_type<tc>, window_params = [{transform_indices = @transform_0, window_bounds = array<i64: 1, 2048>}, {transform_indices = @transform_1, window_bounds = array<i64: 1, 2048>}]} {
    %c0 = arith.constant 0 : index
    %c0_0 = arith.constant 0 : index
    %0 = vector.load %arg1[%c0, %c0_0] : memref<1x2048xf32, #tpu.memory_space<vmem>>, vector<1x2048xf32>
    %cst = arith.constant 5.000000e-01 : f32
    %1 = vector.broadcast %cst : f32 to vector<1x2048xf32>
    %2 = arith.mulf %0, %1 : vector<1x2048xf32>
    %cst_1 = arith.constant 0.707106769 : f32
    %3 = vector.broadcast %cst_1 : f32 to vector<1x2048xf32>
    %4 = arith.mulf %0, %3 : vector<1x2048xf32>
    %5 = math.erf %4 : vector<1x2048xf32>
    %cst_2 = arith.constant 1.000000e+00 : f32
    %6 = vector.broadcast %cst_2 : f32 to vector<1x2048xf32>
    %7 = arith.addf %6, %5 : vector<1x2048xf32>
    %8 = arith.mulf %2, %7 : vector<1x2048xf32>
    %c0_3 = arith.constant 0 : index
    %c0_4 = arith.constant 0 : index
    %9 = vector.load %arg2[%c0_3, %c0_4] : memref<1x2048xf32, #tpu.memory_space<vmem>>, vector<1x2048xf32>
    tpu.vector_store %arg2[%c0_3, %c0_4], %8 {strides = array<i32>} : memref<1x2048xf32, #tpu.memory_space<vmem>>, vector<1x2048xf32>,
    return
  }
  func.func @transform_0(%arg0: i32) -> (i32, i32) {
    %c0_i32 = arith.constant 0 : i32
    %c0_i32_0 = arith.constant 0 : i32
    return %arg0, %c0_i32 : i32, i32
  }
  func.func @transform_1(%arg0: i32) -> (i32, i32) {
    %c0_i32 = arith.constant 0 : i32
    %c0_i32_0 = arith.constant 0 : i32
    return %arg0, %c0_i32 : i32, i32
  }
}

</mosaic_0001>

<llo_original>
// kernel: tpu_custom_call.1
$region0: #{tpu_custom_call.1}
  #allocation0 [shape = 'u32[]', space=smem, size = 0x4, offset = 0x4, fixed_abs, tag = 'smem constant byte address 0x4 - core index']
  #allocation1 [shape = 'u32[144,128]{1,0:T(1,128)}', space=vmem, size = 0x12000, scoped, tag = 'internal scratch']
  %s0 = inlined_call_operand.hbm [shape: f32[1,2048], index: 0, kind: input, shape index: {}]
  %s1 = inlined_call_operand.hbm [shape: f32[1,2048], index: 1, kind: output, shape index: {}]
  %s2 = sld [smem:[#allocation0]]
  $region18: #{tpu_custom_call.1} parent=0
    _
  %s4 = ssub.s32 1, %s2
  %s5 = scalar_select 0, %s4, %s2
  $region1: #{tpu_custom_call.1} parent=0
    #allocation2 [shape = 'u8[8192]{0}', space=vmem, size = 0x2000, scoped, tag = 'input window, operand 0, single buffered']
    #allocation3 [shape = 's32[1]{0}', space=sflag, size = 0x4, scoped, tag = 'scoped memory for tpu_custom_call.1']
    #allocation4 [shape = 's32[1]{0}', space=sflag, size = 0x4, scoped, tag = 'scoped memory for tpu_custom_call.1']
    #allocation5 [shape = 'u8[8192]{0}', space=vmem, size = 0x2000, scoped, tag = 'output window, operand 0, single buffered']
    %6 = vsyncpa [#allocation3], 0
    %7 = vsyncpa [#allocation4], 0
    // Predicated region
    $region2: #{tpu_custom_call.1} parent=1 // pred_check
      _
    $region3: #{tpu_custom_call.1} parent=1 // pred_check_branch
      %9 = sbr.rel (0) target = $region5
    $region4: #{tpu_custom_call.1} parent=1 // pred_region
      %s11 = ssub.s32 256, 256
      %12 = vsyncadd [#allocation3], %s11
      %s14 = sshll.u32 [#allocation2], 4
      %s15 = int_to_ptr.vmem [resolvable:$true] %s14
      %17 = dma.hbm_to_vmem [thread:$0]  %s0, 256, %s15, [#allocation3]
    $region5: #{tpu_custom_call.1} parent=1 // pred_fallthru
      _
    // Predicated region
    $region6: #{tpu_custom_call.1} parent=1 // pred_check
      _
    $region7: #{tpu_custom_call.1} parent=1 // pred_check_branch
      %19 = sbr.rel (0) target = $region9
    $region8: #{tpu_custom_call.1} parent=1 // pred_region
      %20 = dma.done [#allocation3], 256
    $region9: #{tpu_custom_call.1} parent=1 // pred_fallthru
      _
    %v21 = vld [vmem:[#allocation2] sm:$0xff]
    %v22 = vld [vmem:[#allocation2 + $0x8] sm:$0xff]
    %v23 = vmul.f32 %v21, 0.5
    %v24 = vmul.f32 %v22, 0.5
    %v25 = vmul.f32 %v21, 0.70710677
    %v26 = vmul.f32 %v22, 0.70710677
    %v27 = verf.f32.pop %v25
    %v28 = verf.f32.pop %v26
    %v29 = vadd.f32 %v27, 1.0
    %v30 = vadd.f32 %v28, 1.0
    %v31 = vmul.f32 %v23, %v29
    %v32 = vmul.f32 %v24, %v30
    %33 = vst [vmem:[#allocation5] sm:$0xff] %v31
    %34 = vst [vmem:[#allocation5 + $0x8] sm:$0xff] %v32
    // Predicated region
    $region10: #{tpu_custom_call.1} parent=1 // pred_check
      _
    $region11: #{tpu_custom_call.1} parent=1 // pred_check_branch
      %36 = sbr.rel (0) target = $region13
    $region12: #{tpu_custom_call.1} parent=1 // pred_region
      %s38 = ssub.s32 256, 256
      %39 = vsyncadd [#allocation4], %s38
      %s41 = sshll.u32 [#allocation5], 4
      %s42 = int_to_ptr.vmem [resolvable:$true] %s41
      %44 = dma.vmem_to_hbm [thread:$0]  %s42, 256, %s1, [#allocation4]
    $region13: #{tpu_custom_call.1} parent=1 // pred_fallthru
      _
    // Predicated region
    $region14: #{tpu_custom_call.1} parent=1 // pred_check
      _
    $region15: #{tpu_custom_call.1} parent=1 // pred_check_branch
      %46 = sbr.rel (0) target = $region17
    $region16: #{tpu_custom_call.1} parent=1 // pred_region
      %47 = dma.done [#allocation4], 256
    $region17: #{tpu_custom_call.1} parent=1 // pred_fallthru
      _
    %48 = vsyncpa [#allocation3], 1
    %49 = vsyncpa [#allocation4], 1

</llo_original>
